<compile_context>
chip_gen: v7x
topology: tpu7x:2x2x1
jax: 0.10.0
libtpu: 0.0.40
codegen_flags: <defaults>
</compile_context>

<pallas_src>
import functools

import jax
import jax.numpy as jnp
from jax.experimental import pallas as pl
from jax.experimental.pallas import tpu as pltpu

_LANES = 128
_SUBLANES = 8
# (2048, 128) f32 tile = 1 MiB; 2 inputs x 2 buffers = 4 MiB VMEM -> fits the
# 32 MiB scoped-VMEM default on v5e / v6e / v7x (64 MiB physical on v7x).
_TILE_ROWS_MAX = 2048


def _loss_kernel(pred_ref, target_ref, out_ref,
                 acc_sq, acc_d, acc_max,
                 *, tile_r, n_elems, need_mask):
    i = pl.program_id(0)
    last = pl.num_programs(0) - 1

    @pl.when(i == 0)
    def _init():
        acc_sq[...] = jnp.zeros_like(acc_sq)
        acc_d[...] = jnp.zeros_like(acc_d)
        acc_max[...] = jnp.full_like(acc_max, -jnp.inf)

    def _accumulate(masked):
        p = pred_ref[...].astype(jnp.float32)
        t = target_ref[...].astype(jnp.float32)
        d = p - t
        sq = d * d
        if masked:
            # Mask (a) lane padding in the final data row and (b) out-of-bounds
            # rows of a partial last block. n_elems / tile_r are static ints,
            # so this formulation avoids any 32-bit flat-index overflow.
            n_full_rows = n_elems // _LANES
            n_rem = n_elems % _LANES
            row = i * tile_r + jax.lax.broadcasted_iota(
                jnp.int32, (tile_r, _LANES), 0)
            m = row < n_full_rows
            if n_rem:
                col = jax.lax.broadcasted_iota(jnp.int32, (tile_r, _LANES), 1)
                m = m | ((row == n_full_rows) & (col < n_rem))
            sq = jnp.where(m, sq, 0.0)
            d = jnp.where(m, d, 0.0)
            p = jnp.where(m, p, -jnp.inf)
        # Free relabel (tile_r, 128) -> (g, 8, 128); axis-0 reduce is pure VPU
        # vreg adds/maxes into the resident (8, 128) accumulators.
        g = tile_r // _SUBLANES
        acc_sq[...] += jnp.sum(sq.reshape(g, _SUBLANES, _LANES), axis=0)
        acc_d[...] += jnp.sum(d.reshape(g, _SUBLANES, _LANES), axis=0)
        acc_max[...] = jnp.maximum(
            acc_max[...], jnp.max(p.reshape(g, _SUBLANES, _LANES), axis=0))

    if need_mask:
        # Only the last block can contain padding / OOB rows.
        @pl.when(i < last)
        def _():
            _accumulate(False)

        @pl.when(i == last)
        def _():
            _accumulate(True)
    else:
        _accumulate(False)

    @pl.when(i == last)
    def _finalize():
        total_sq = jnp.sum(acc_sq[...])
        total_d = jnp.sum(acc_d[...])
        max_p = jnp.max(acc_max[...])
        mse = total_sq / jnp.float32(n_elems)
        sum_term = jnp.abs(total_d)
        # torch's (max(pred) < 1) bool promotes to 0./1. when added.
        max_term = jnp.where(max_p < 1.0, 1.0, 0.0)
        out_ref[0, 0] = mse + sum_term + max_term


def prediction_loss_box_wise(pred, target, *, tile_rows_max=_TILE_ROWS_MAX):
    assert pred.shape == target.shape, "pred and target must match in shape"
    n = int(pred.size)
    assert n > 0

    # Keep the native dtype (e.g. bf16) on the HBM side; cast in-kernel.
    p = pred.reshape(-1)
    t = target.reshape(-1)

    lane_pad = (-n) % _LANES
    if lane_pad:
        # Only hit when numel is not a multiple of 128; pad values are fully
        # masked out in-kernel, so zeros are fine.
        # TODO(synk): a manual-DMA tail block would avoid even this copy.
        p = jnp.pad(p, (0, lane_pad))
        t = jnp.pad(t, (0, lane_pad))

    rows = (n + lane_pad) // _LANES
    p2 = p.reshape(rows, _LANES)
    t2 = t.reshape(rows, _LANES)

    # Sublane alignment for the packed dtype: 8 (f32), 16 (bf16), 32 (8-bit).
    itemsize = jnp.dtype(pred.dtype).itemsize
    sub_align = _SUBLANES * max(1, 4 // max(1, itemsize))
    tile_cap = max(sub_align, (tile_rows_max // sub_align) * sub_align)
    tile_r = min(tile_cap, ((rows + sub_align - 1) // sub_align) * sub_align)
    nblk = (rows + tile_r - 1) // tile_r
    need_mask = (nblk * tile_r * _LANES) != n

    kernel = functools.partial(
        _loss_kernel, tile_r=tile_r, n_elems=n, need_mask=need_mask)

    out = pl.pallas_call(
        kernel,
        out_shape=jax.ShapeDtypeStruct((1, 1), jnp.float32),
        grid_spec=pltpu.PrefetchScalarGridSpec(
            num_scalar_prefetch=0,
            grid=(nblk,),
            in_specs=[
                pl.BlockSpec((tile_r, _LANES), lambda i: (i, 0)),
                pl.BlockSpec((tile_r, _LANES), lambda i: (i, 0)),
            ],
            out_specs=pl.BlockSpec((1, 1), lambda i: (0, 0),
                                   memory_space=pltpu.SMEM),
            scratch_shapes=[
                pltpu.VMEM((_SUBLANES, _LANES), jnp.float32),  # sum((p - t)^2)
                pltpu.VMEM((_SUBLANES, _LANES), jnp.float32),  # sum(p - t)
                pltpu.VMEM((_SUBLANES, _LANES), jnp.float32),  # max(p)
            ],
        ),
        compiler_params=pltpu.CompilerParams(
            dimension_semantics=("arbitrary",)),
    )(p2, t2)
    return out[0, 0]


def _reference(pred, target):
    pred = pred.astype(jnp.float32)
    target = target.astype(jnp.float32)
    mse = jnp.mean((pred - target) ** 2)
    sum_term = jnp.abs(jnp.sum(pred) - jnp.sum(target))
    max_term = (jnp.max(pred) < 1.0).astype(jnp.float32)
    return mse + sum_term + max_term


if __name__ == "__main__":
    key = jax.random.PRNGKey(0)
    k1, k2, k3, k4, k5, k6 = jax.random.split(key, 6)

    # Primary: NCHW box-count heat maps (single block, unmasked fast path).
    pred = jax.random.normal(k1, (2, 4, 16, 16), dtype=jnp.float32)
    target = jax.random.normal(k2, (2, 4, 16, 16), dtype=jnp.float32)
    loss = jax.block_until_ready(prediction_loss_box_wise(pred, target))
    ref = _reference(pred, target)
    assert jnp.allclose(loss, ref, rtol=1e-4, atol=1e-4), (loss, ref)

    # Ragged numel (not a multiple of 128) -> in-kernel masked tail path.
    pred_odd = jax.random.normal(k3, (2, 3, 13, 17), dtype=jnp.float32)
    target_odd = jax.random.normal(k4, (2, 3, 13, 17), dtype=jnp.float32)
    loss_odd = jax.block_until_ready(
        prediction_loss_box_wise(pred_odd, target_odd))
    ref_odd = _reference(pred_odd, target_odd)
    assert jnp.allclose(loss_odd, ref_odd, rtol=1e-4, atol=1e-4), (
        loss_odd, ref_odd)

    # Multi-block path (accumulators resident across the grid): small tile cap
    # so the grid has several steps even at test size, plus a masked tail block.
    pred_mb = jax.random.normal(k5, (2, 4, 32, 80), dtype=jnp.float32)
    target_mb = jax.random.normal(k6, (2, 4, 32, 80), dtype=jnp.float32)
    loss_mb = jax.block_until_ready(
        prediction_loss_box_wise(pred_mb, target_mb, tile_rows_max=64))
    ref_mb = _reference(pred_mb, target_mb)
    assert jnp.allclose(loss_mb, ref_mb, rtol=1e-4, atol=1e-4), (
        loss_mb, ref_mb)

    print("KERNEL_OK")
</pallas_src>

<mosaic_0001>
module attributes {stable_mosaic.version = 11 : i64} {
  func.func @_loss_kernel(%arg0: i32, %arg1: memref<16x128xf32, #tpu.memory_space<vmem>>, %arg2: memref<16x128xf32, #tpu.memory_space<vmem>>, %arg3: memref<1x1xf32, #tpu.memory_space<smem>>, %arg4: memref<8x128xf32, #tpu.memory_space<vmem>>, %arg5: memref<8x128xf32, #tpu.memory_space<vmem>>, %arg6: memref<8x128xf32, #tpu.memory_space<vmem>>) attributes {dimension_semantics = [#tpu.dimension_semantics<arbitrary>], iteration_bounds = array<i64: 1>, scalar_prefetch = 0 : i64, scratch_operands = 3 : i64, tpu.core_type = #tpu.core_type<tc>, window_params = [{transform_indices = @transform_0, window_bounds = array<i64: 16, 128>}, {transform_indices = @transform_1, window_bounds = array<i64: 16, 128>}, {transform_indices = @transform_2, window_bounds = array<i64: 1, 1>}]} {
    %c0_i32 = arith.constant 0 : i32
    %0 = arith.cmpi eq, %arg0, %c0_i32 : i32
    %1 = arith.extui %0 : i1 to i32
    %c0_i32_0 = arith.constant 0 : i32
    %2 = arith.cmpi ne, %1, %c0_i32_0 : i32
    scf.if %2 {
      %cst_20 = arith.constant 0.000000e+00 : f32
      %25 = vector.broadcast %cst_20 : f32 to vector<8x128xf32>
      %c0_21 = arith.constant 0 : index
      %c0_22 = arith.constant 0 : index
      %26 = vector.load %arg4[%c0_21, %c0_22] : memref<8x128xf32, #tpu.memory_space<vmem>>, vector<8x128xf32>
      tpu.vector_store %arg4[%c0_21, %c0_22], %25 {strides = array<i32>} : memref<8x128xf32, #tpu.memory_space<vmem>>, vector<8x128xf32>,
      %cst_23 = arith.constant 0.000000e+00 : f32
      %27 = vector.broadcast %cst_23 : f32 to vector<8x128xf32>
      %c0_24 = arith.constant 0 : index
      %c0_25 = arith.constant 0 : index
      %28 = vector.load %arg5[%c0_24, %c0_25] : memref<8x128xf32, #tpu.memory_space<vmem>>, vector<8x128xf32>
      tpu.vector_store %arg5[%c0_24, %c0_25], %27 {strides = array<i32>} : memref<8x128xf32, #tpu.memory_space<vmem>>, vector<8x128xf32>,
      %cst_26 = arith.constant 0xFF800000 : f32
      %29 = vector.broadcast %cst_26 : f32 to vector<8x128xf32>
      %c0_27 = arith.constant 0 : index
      %c0_28 = arith.constant 0 : index
      %30 = vector.load %arg6[%c0_27, %c0_28] : memref<8x128xf32, #tpu.memory_space<vmem>>, vector<8x128xf32>
      tpu.vector_store %arg6[%c0_27, %c0_28], %29 {strides = array<i32>} : memref<8x128xf32, #tpu.memory_space<vmem>>, vector<8x128xf32>,
    } else {
    }
    %c0 = arith.constant 0 : index
    %c0_1 = arith.constant 0 : index
    %3 = vector.load %arg1[%c0, %c0_1] : memref<16x128xf32, #tpu.memory_space<vmem>>, vector<16x128xf32>
    %c0_2 = arith.constant 0 : index
    %c0_3 = arith.constant 0 : index
    %4 = vector.load %arg2[%c0_2, %c0_3] : memref<16x128xf32, #tpu.memory_space<vmem>>, vector<16x128xf32>
    %5 = arith.subf %3, %4 : vector<16x128xf32>
    %6 = arith.mulf %5, %5 : vector<16x128xf32>
    %c0_4 = arith.constant 0 : index
    %c0_5 = arith.constant 0 : index
    %7 = vector.load %arg4[%c0_4, %c0_5] : memref<8x128xf32, #tpu.memory_space<vmem>>, vector<8x128xf32>
    %8 = vector.shape_cast %6 : vector<16x128xf32> to vector<2x8x128xf32>
    %cst = arith.constant dense<0.000000e+00> : vector<8x128xf32>
    %9 = vector.multi_reduction <add>, %8, %cst [0] : vector<2x8x128xf32> to vector<8x128xf32>
    %10 = arith.addf %7, %9 : vector<8x128xf32>
    %c0_6 = arith.constant 0 : index
    %c0_7 = arith.constant 0 : index
    %11 = vector.load %arg4[%c0_6, %c0_7] : memref<8x128xf32, #tpu.memory_space<vmem>>, vector<8x128xf32>
    tpu.vector_store %arg4[%c0_6, %c0_7], %10 {strides = array<i32>} : memref<8x128xf32, #tpu.memory_space<vmem>>, vector<8x128xf32>,
    %c0_8 = arith.constant 0 : index
    %c0_9 = arith.constant 0 : index
    %12 = vector.load %arg5[%c0_8, %c0_9] : memref<8x128xf32, #tpu.memory_space<vmem>>, vector<8x128xf32>
    %13 = vector.shape_cast %5 : vector<16x128xf32> to vector<2x8x128xf32>
    %cst_10 = arith.constant dense<0.000000e+00> : vector<8x128xf32>
    %14 = vector.multi_reduction <add>, %13, %cst_10 [0] : vector<2x8x128xf32> to vector<8x128xf32>
    %15 = arith.addf %12, %14 : vector<8x128xf32>
    %c0_11 = arith.constant 0 : index
    %c0_12 = arith.constant 0 : index
    %16 = vector.load %arg5[%c0_11, %c0_12] : memref<8x128xf32, #tpu.memory_space<vmem>>, vector<8x128xf32>
    tpu.vector_store %arg5[%c0_11, %c0_12], %15 {strides = array<i32>} : memref<8x128xf32, #tpu.memory_space<vmem>>, vector<8x128xf32>,
    %c0_13 = arith.constant 0 : index
    %c0_14 = arith.constant 0 : index
    %17 = vector.load %arg6[%c0_13, %c0_14] : memref<8x128xf32, #tpu.memory_space<vmem>>, vector<8x128xf32>
    %18 = vector.shape_cast %3 : vector<16x128xf32> to vector<2x8x128xf32>
    %cst_15 = arith.constant dense<0xFF800000> : vector<8x128xf32>
    %19 = vector.multi_reduction <maximumf>, %18, %cst_15 [0] : vector<2x8x128xf32> to vector<8x128xf32>
    %20 = arith.maximumf %17, %19 : vector<8x128xf32>
    %c0_16 = arith.constant 0 : index
    %c0_17 = arith.constant 0 : index
    %21 = vector.load %arg6[%c0_16, %c0_17] : memref<8x128xf32, #tpu.memory_space<vmem>>, vector<8x128xf32>
    tpu.vector_store %arg6[%c0_16, %c0_17], %20 {strides = array<i32>} : memref<8x128xf32, #tpu.memory_space<vmem>>, vector<8x128xf32>,
    %c0_i32_18 = arith.constant 0 : i32
    %22 = arith.cmpi eq, %arg0, %c0_i32_18 : i32
    %23 = arith.extui %22 : i1 to i32
    %c0_i32_19 = arith.constant 0 : i32
    %24 = arith.cmpi ne, %23, %c0_i32_19 : i32
    scf.if %24 {
      %c0_20 = arith.constant 0 : index
      %c0_21 = arith.constant 0 : index
      %25 = vector.load %arg4[%c0_20, %c0_21] : memref<8x128xf32, #tpu.memory_space<vmem>>, vector<8x128xf32>
      %26 = vector.shape_cast %25 : vector<8x128xf32> to vector<1x8x128xf32>
      %cst_22 = arith.constant dense<0.000000e+00> : vector<1xf32>
      %27 = vector.multi_reduction <add>, %26, %cst_22 [1, 2] : vector<1x8x128xf32> to vector<1xf32>
      %28 = vector.shape_cast %27 : vector<1xf32> to vector<1x1x1xf32>
      %29 = vector.extract %28[0, 0, 0] : f32 from vector<1x1x1xf32>
      %c0_23 = arith.constant 0 : index
      %c0_24 = arith.constant 0 : index
      %30 = vector.load %arg5[%c0_23, %c0_24] : memref<8x128xf32, #tpu.memory_space<vmem>>, vector<8x128xf32>
      %31 = vector.shape_cast %30 : vector<8x128xf32> to vector<1x8x128xf32>
      %cst_25 = arith.constant dense<0.000000e+00> : vector<1xf32>
      %32 = vector.multi_reduction <add>, %31, %cst_25 [1, 2] : vector<1x8x128xf32> to vector<1xf32>
      %33 = vector.shape_cast %32 : vector<1xf32> to vector<1x1x1xf32>
      %34 = vector.extract %33[0, 0, 0] : f32 from vector<1x1x1xf32>
      %c0_26 = arith.constant 0 : index
      %c0_27 = arith.constant 0 : index
      %35 = vector.load %arg6[%c0_26, %c0_27] : memref<8x128xf32, #tpu.memory_space<vmem>>, vector<8x128xf32>
      %36 = vector.shape_cast %35 : vector<8x128xf32> to vector<1x8x128xf32>
      %cst_28 = arith.constant dense<0xFF800000> : vector<1xf32>
      %37 = vector.multi_reduction <maximumf>, %36, %cst_28 [1, 2] : vector<1x8x128xf32> to vector<1xf32>
      %38 = vector.shape_cast %37 : vector<1xf32> to vector<1x1x1xf32>
      %39 = vector.extract %38[0, 0, 0] : f32 from vector<1x1x1xf32>
      %cst_29 = arith.constant 2.048000e+03 : f32
      %40 = arith.divf %29, %cst_29 : f32
      %41 = math.absf %34 : f32
      %cst_30 = arith.constant 1.000000e+00 : f32
      %42 = arith.cmpf olt, %39, %cst_30 : f32
      %cst_31 = arith.constant 1.000000e+00 : f32
      %cst_32 = arith.constant 0.000000e+00 : f32
      %43 = arith.select %42, %cst_31, %cst_32 : f32
      %44 = arith.addf %40, %41 : f32
      %45 = arith.addf %44, %43 : f32
      %c0_33 = arith.constant 0 : index
      %c0_34 = arith.constant 0 : index
      %46 = memref.load %arg3[%c0_33, %c0_34] : memref<1x1xf32, #tpu.memory_space<smem>>
      memref.store %45, %arg3[%c0_33, %c0_34] : memref<1x1xf32, #tpu.memory_space<smem>>
    } else {
    }
    return
  }
  func.func @transform_0(%arg0: i32) -> (i32, i32) {
    %c0_i32 = arith.constant 0 : i32
    %c0_i32_0 = arith.constant 0 : i32
    return %arg0, %c0_i32 : i32, i32
  }
  func.func @transform_1(%arg0: i32) -> (i32, i32) {
    %c0_i32 = arith.constant 0 : i32
    %c0_i32_0 = arith.constant 0 : i32
    return %arg0, %c0_i32 : i32, i32
  }
  func.func @transform_2(%arg0: i32) -> (i32, i32) {
    %c0_i32 = arith.constant 0 : i32
    %c0_i32_0 = arith.constant 0 : i32
    %c0_i32_1 = arith.constant 0 : i32
    return %c0_i32, %c0_i32_0 : i32, i32
  }
}

</mosaic_0001>

<llo_original>
// kernel: tpu_custom_call.1
$region0: #{tpu_custom_call.1}
  #allocation0 [shape = 'u32[]', space=smem, size = 0x4, offset = 0x4, fixed_abs, tag = 'smem constant byte address 0x4 - core index']
  #allocation1 [shape = 'u32[144,128]{1,0:T(1,128)}', space=vmem, size = 0x12000, scoped, tag = 'internal scratch']
  #allocation2 [shape = 'f32[8,128]{1,0:T(8,128)}', space=vmem, size = 0x1000, scoped, tag = 'scratch operand']
  #allocation3 [shape = 'f32[8,128]{1,0:T(8,128)}', space=vmem, size = 0x1000, scoped, tag = 'scratch operand']
  #allocation4 [shape = 'f32[8,128]{1,0:T(8,128)}', space=vmem, size = 0x1000, scoped, tag = 'scratch operand']
  %s0 = inlined_call_operand.hbm [shape: f32[16,128], index: 0, kind: input, shape index: {}]
  %s1 = inlined_call_operand.hbm [shape: f32[16,128], index: 1, kind: input, shape index: {}]
  %s2 = inlined_call_operand.hbm [shape: f32[1,1], index: 2, kind: output, shape index: {}]
  %s3 = sld [smem:[#allocation0]]
  $region34: #{tpu_custom_call.1} parent=0
    _
  %s5 = ssub.s32 1, %s3
  %s6 = scalar_select 0, %s5, %s3
  $region1: #{tpu_custom_call.1} parent=0
    #allocation5 [shape = 'u8[8192]{0}', space=vmem, size = 0x2000, scoped, tag = 'input window, operand 0, single buffered']
    #allocation6 [shape = 's32[1]{0}', space=sflag, size = 0x4, scoped, tag = 'scoped memory for tpu_custom_call.1']
    #allocation7 [shape = 's32[1]{0}', space=sflag, size = 0x4, scoped, tag = 'scoped memory for tpu_custom_call.1']
    #allocation8 [shape = 'u8[8192]{0}', space=vmem, size = 0x2000, scoped, tag = 'input window, operand 1, single buffered']
    #allocation9 [shape = 's32[1]{0}', space=sflag, size = 0x4, scoped, tag = 'scoped memory for tpu_custom_call.1']
    #allocation10 [shape = 'u8[512]{0}', space=smem, size = 0x200, scoped, tag = 'output window, operand 0, single buffered']
    %7 = vsyncpa [#allocation6], 0
    %8 = vsyncpa [#allocation9], 0
    %9 = vsyncpa [#allocation7], 0
    // Predicated region
    $region2: #{tpu_custom_call.1} parent=1 // pred_check
      _
    $region3: #{tpu_custom_call.1} parent=1 // pred_check_branch
      %11 = sbr.rel (0) target = $region5
    $region4: #{tpu_custom_call.1} parent=1 // pred_region
      %s13 = ssub.s32 256, 256
      %14 = vsyncadd [#allocation6], %s13
      %s15 = sshll.u32 [#allocation5], 4
      %s16 = int_to_ptr.vmem [resolvable:$true] %s15
      %21 = dma.hbm_to_vmem [thread:$0]  %s0, 256, %s16, [#allocation6], 128, 128, 8
    $region5: #{tpu_custom_call.1} parent=1 // pred_fallthru
      _
    // Predicated region
    $region6: #{tpu_custom_call.1} parent=1 // pred_check
      _
    $region7: #{tpu_custom_call.1} parent=1 // pred_check_branch
      %23 = sbr.rel (0) target = $region9
    $region8: #{tpu_custom_call.1} parent=1 // pred_region
      %s25 = ssub.s32 256, 256
      %26 = vsyncadd [#allocation9], %s25
      %s27 = sshll.u32 [#allocation8], 4
      %s28 = int_to_ptr.vmem [resolvable:$true] %s27
      %33 = dma.hbm_to_vmem [thread:$0]  %s1, 256, %s28, [#allocation9], 128, 128, 8
    $region9: #{tpu_custom_call.1} parent=1 // pred_fallthru
      _
    // Predicated region
    $region10: #{tpu_custom_call.1} parent=1 // pred_check
      _
    $region11: #{tpu_custom_call.1} parent=1 // pred_check_branch
      %35 = sbr.rel (0) target = $region13
    $region12: #{tpu_custom_call.1} parent=1 // pred_region
      %36 = dma.done [#allocation6], 256
    $region13: #{tpu_custom_call.1} parent=1 // pred_fallthru
      _
    // Predicated region
    $region14: #{tpu_custom_call.1} parent=1 // pred_check
      _
    $region15: #{tpu_custom_call.1} parent=1 // pred_check_branch
      %38 = sbr.rel (0) target = $region17
    $region16: #{tpu_custom_call.1} parent=1 // pred_region
      %39 = dma.done [#allocation9], 256
    $region17: #{tpu_custom_call.1} parent=1 // pred_fallthru
      _
    %p40 = scmp.eq.s32.totalorder 0, 0
    // Predicated region
    $region18: #{tpu_custom_call.1} parent=1 // pred_check
      %p41 = pneg %p40
    $region19: #{tpu_custom_call.1} parent=1 // pred_check_branch
      %43 = sbr.rel (%p41) target = $region21
    $region20: #{tpu_custom_call.1} parent=1 // pred_region
      %44 = vst [vmem:[#allocation2] sm:$0xff] 0.0
      %45 = vst [vmem:[#allocation3] sm:$0xff] 0.0
      %46 = vst [vmem:[#allocation4] sm:$0xff] -inf
    $region21: #{tpu_custom_call.1} parent=1 // pred_fallthru
      _
    %v47 = vld [vmem:[#allocation5] sm:$0xff]
    %v48 = vld [vmem:[#allocation5 + $0x8] sm:$0xff]
    %v49 = vld [vmem:[#allocation8] sm:$0xff]
    %v50 = vld [vmem:[#allocation8 + $0x8] sm:$0xff]
    %v51 = vsub.f32 %v47, %v49
    %v52 = vsub.f32 %v48, %v50
    %v53 = vmul.f32 %v51, %v51
    %v54 = vmul.f32 %v52, %v52
    %v55 = vld [vmem:[#allocation2] sm:$0xff]
    %v56 = vadd.f32 %v53, %v54
    %v57 = vadd.f32 %v55, %v56
    %58 = vst [vmem:[#allocation2] sm:$0xff] %v57
    %v59 = vld [vmem:[#allocation3] sm:$0xff]
    %v60 = vadd.f32 %v51, %v52
    %v61 = vadd.f32 %v59, %v60
    %62 = vst [vmem:[#allocation3] sm:$0xff] %v61
    %v63 = vld [vmem:[#allocation4] sm:$0xff]
    %v64 = vmax.f32 %v47, %v48
    %v65 = vmax.f32 %v63, %v64
    %66 = vst [vmem:[#allocation4] sm:$0xff] %v65
    // Predicated region
    $region22: #{tpu_custom_call.1} parent=1 // pred_check
      %p67 = pneg %p40
    $region23: #{tpu_custom_call.1} parent=1 // pred_check_branch
      %69 = sbr.rel (%p67) target = $region25
    $region24: #{tpu_custom_call.1} parent=1 // pred_region
      %v70 = vld [vmem:[#allocation2] sm:$0xff]
      %71 = vadd.xlane.f32.xlu0 %v70
      %v72 = vpop.xlane.xlu0 %71
      %v73 = vrot.slane %v72, 4
      %v74 = vadd.f32 %v72, %v73
      %v75 = vrot.slane %v74, 2
      %v76 = vadd.f32 %v74, %v75
      %v77 = vrot.slane %v76, 1
      %v78 = vadd.f32 %v76, %v77
      %s79 = vtos %v78
      %v80 = vld [vmem:[#allocation3] sm:$0xff]
      %81 = vadd.xlane.f32.xlu0 %v80
      %v82 = vpop.xlane.xlu0 %81
      %v83 = vrot.slane %v82, 4
      %v84 = vadd.f32 %v82, %v83
      %v85 = vrot.slane %v84, 2
      %v86 = vadd.f32 %v84, %v85
      %v87 = vrot.slane %v86, 1
      %v88 = vadd.f32 %v86, %v87
      %s89 = vtos %v88
      %v90 = vld [vmem:[#allocation4] sm:$0xff]
      %91 = vmax.xlane.f32.xlu0 %v90
      %v92 = vpop.xlane.xlu0 %91
      %v93 = vrot.slane %v92, 4
      %v94 = vmax.f32 %v92, %v93
      %v95 = vrot.slane %v94, 2
      %v96 = vmax.f32 %v94, %v95
      %v97 = vrot.slane %v96, 1
      %v98 = vmax.f32 %v96, %v97
      %s99 = vtos %v98
      %v100 = vrcp.pop 2048.0
      %s101 = vtos %v100
      %s102 = smul.f32 %s79, %s101
      %s103 = sand.u32 2147483647, %s89
      %p104 = scmp.lt.f32.partialorder %s99, 1.0
      %s105 = scalar_select %p104, 1.0, 0.0
      %s106 = sadd.f32 %s102, %s103
      %s107 = sadd.f32 %s106, %s105
      %s108 = scalar_lea.smem [#allocation10], 0
      %109 = sst [smem:[%s108]] %s107
    $region25: #{tpu_custom_call.1} parent=1 // pred_fallthru
      _
    // Predicated region
    $region26: #{tpu_custom_call.1} parent=1 // pred_check
      _
    $region27: #{tpu_custom_call.1} parent=1 // pred_check_branch
      %111 = sbr.rel (0) target = $region29
    $region28: #{tpu_custom_call.1} parent=1 // pred_region
      %s113 = ssub.s32 16, 16
      %114 = vsyncadd [#allocation7], %s113
      %117 = dma.smem_to_hbm [#allocation10], 16, %s2, [#allocation7]
    $region29: #{tpu_custom_call.1} parent=1 // pred_fallthru
      _
    // Predicated region
    $region30: #{tpu_custom_call.1} parent=1 // pred_check
      _
    $region31: #{tpu_custom_call.1} parent=1 // pred_check_branch
      %119 = sbr.rel (0) target = $region33
    $region32: #{tpu_custom_call.1} parent=1 // pred_region
      %120 = dma.done [#allocation7], 16
    $region33: #{tpu_custom_call.1} parent=1 // pred_fallthru
      _
    %121 = sfence
    %122 = vsyncpa [#allocation6], 1
    %123 = vsyncpa [#allocation9], 1
    %124 = vsyncpa [#allocation7], 1

</llo_original>
